<compile_context>
chip_gen: v7x
topology: tpu7x:2x2x1
jax: 0.10.0
libtpu: 0.0.40
codegen_flags: <defaults>
</compile_context>

<pallas_src>
import functools

import jax
import jax.numpy as jnp
from jax.experimental import pallas as pl
from jax.experimental.pallas import tpu as pltpu


_TM_CAP = 2048  # lane-tile cap: amortizes per-step overhead, fits VMEM on v5e/v6e/v7x


def _round_up(a, b):
    return -(-a // b) * b


def _pinn_kernel(n_layers, p_in, p_hidden, x_ref, w_ref, b_ref, out_ref):
    """Fused MLP kernel, transposed layout.

    x_ref   : [p_in, tm]        zero-padded input features, batch on the lane axis
    w_ref   : [L, P, P_cols]    stacked zero-padded torch-layout (out, in) weights
    b_ref   : [L, P, 1]         stacked zero-padded biases (column vectors)
    out_ref : [out_dim, tm]

    Hidden layers: tanh(W @ h + b); last layer: W @ h + b (no activation).
    Zero padding is self-consistent: padded rows stay exactly 0 through every
    hidden layer and padded weight columns ignore them.
    """
    h = x_ref[...]
    for i in range(n_layers):                       # static Python loop (unrolled)
        k = p_in if i == 0 else p_hidden            # static contraction width
        w = w_ref[i][:, :k]                         # [P, k] static slice
        z = jnp.dot(w, h, preferred_element_type=jnp.float32) + b_ref[i]
        if i != n_layers - 1:
            h = jnp.tanh(z).astype(w_ref.dtype)     # keep compute dtype (no-op for f32)
        else:
            h = z
    out_ref[...] = h[: out_ref.shape[0], :].astype(out_ref.dtype)


def prepare_pinn_params(weights, biases, in_dim, *, use_bf16=False):
    """Pad & stack torch-layout (out, in) weights/biases ONCE (outside hot path).

    Returns (w_stack [L, P, P_cols], b_stack [L, P, 1]).
    """
    n_layers = len(weights)
    out_dims = [w.shape[0] for w in weights]
    P = max(8, _round_up(max(out_dims), 8))          # hidden/output feature pad
    p_in = max(8, _round_up(in_dim, 8))              # input feature pad (sublane min)
    P_cols = max(P, p_in)
    dt = jnp.bfloat16 if use_bf16 else jnp.float32
    w_stack = jnp.zeros((n_layers, P, P_cols), dt)
    b_stack = jnp.zeros((n_layers, P, 1), dt)
    for i, (w, b) in enumerate(zip(weights, biases)):
        o, k = w.shape
        w_stack = w_stack.at[i, :o, :k].set(w.astype(dt))
        b_stack = b_stack.at[i, :o, 0].set(b.reshape(-1).astype(dt))
    return w_stack, b_stack


@functools.partial(jax.jit, static_argnames=("out_dim", "tm_cap"))
def pinn_forward_stacked(x, w_stack, b_stack, *, out_dim, tm_cap=_TM_CAP):
    """Jitted PINN forward on pre-stacked params.

    x:        [N, in_dim]
    w_stack:  [L, P, P_cols]   (from prepare_pinn_params)
    b_stack:  [L, P, 1]
    returns:  [N, out_dim] float32
    """
    n, in_dim = x.shape
    n_layers, P, P_cols = w_stack.shape
    p_in = max(8, _round_up(in_dim, 8))
    assert p_in <= P_cols, "input feature pad exceeds stacked weight columns"

    # Lane tiling: batch on the lane axis; cap the tile and let the grid grow.
    tm = min(tm_cap, _round_up(n, 128))
    n_pad = _round_up(n, tm)
    grid = (n_pad // tm,)

    # Transposed, zero-padded input [p_in, n_pad] (fused inside this jit).
    x_t = (
        jnp.zeros((p_in, n_pad), w_stack.dtype)
        .at[:in_dim, :n]
        .set(x.T.astype(w_stack.dtype))
    )

    kernel = functools.partial(_pinn_kernel, n_layers, p_in, P)

    out_t = pl.pallas_call(
        kernel,
        out_shape=jax.ShapeDtypeStruct((out_dim, n_pad), jnp.float32),
        grid_spec=pltpu.PrefetchScalarGridSpec(
            num_scalar_prefetch=0,
            grid=grid,
            in_specs=[
                pl.BlockSpec((p_in, tm), lambda i: (0, i)),                 # x tiles
                pl.BlockSpec((n_layers, P, P_cols), lambda i: (0, 0, 0)),   # weights (resident)
                pl.BlockSpec((n_layers, P, 1), lambda i: (0, 0, 0)),        # biases  (resident)
            ],
            out_specs=pl.BlockSpec((out_dim, tm), lambda i: (0, i)),
        ),
        compiler_params=pltpu.CompilerParams(
            dimension_semantics=("parallel",),
        ),
    )(x_t, w_stack, b_stack)

    return out_t[:, :n].T


def pinn_forward(x, weights, biases, *, use_bf16=False):
    """Convenience one-shot wrapper. For repeated calls, hoist prepare_pinn_params."""
    w_stack, b_stack = prepare_pinn_params(weights, biases, x.shape[1], use_bf16=use_bf16)
    return pinn_forward_stacked(x, w_stack, b_stack, out_dim=weights[-1].shape[0])


def init_params(layers, key):
    """Deterministic nn.Linear-style init: U(-1/sqrt(fan_in), 1/sqrt(fan_in)).

    Weights are kept in torch layout (out_features, in_features)."""
    weights, biases = [], []
    for i in range(len(layers) - 1):
        fan_in, fan_out = layers[i], layers[i + 1]
        key, kw, kb = jax.random.split(key, 3)
        bound = 1.0 / jnp.sqrt(fan_in)
        w = jax.random.uniform(kw, (fan_out, fan_in), jnp.float32, -bound, bound)
        b = jax.random.uniform(kb, (fan_out,), jnp.float32, -bound, bound)
        weights.append(w)
        biases.append(b)
    return weights, biases


def reference_forward(x, weights, biases):
    h = x
    for i, (w, b) in enumerate(zip(weights, biases)):
        h = h @ w.T + b
        if i != len(weights) - 1:
            h = jnp.tanh(h)
    return h


if __name__ == "__main__":
    # PINN for the diffusion case: input (x, t) -> scalar u.
    layers = [2, 32, 32, 32, 1]
    batch = 256

    key = jax.random.PRNGKey(0)
    key, kx = jax.random.split(key)
    x = jax.random.normal(kx, (batch, layers[0]), jnp.float32)

    weights, biases = init_params(layers, key)

    # Stack/pad the (static) parameters once, outside the per-call hot path.
    w_stack, b_stack = prepare_pinn_params(weights, biases, layers[0], use_bf16=False)

    out = pinn_forward_stacked(x, w_stack, b_stack, out_dim=layers[-1])
    out = jax.block_until_ready(out)

    ref = reference_forward(x, weights, biases)
    assert out.shape == (batch, layers[-1])
    assert jnp.allclose(out, ref, atol=1e-5, rtol=1e-5), "mismatch vs reference"

    print("KERNEL_OK")
</pallas_src>

<mosaic_0001>
module attributes {stable_mosaic.version = 11 : i64} {
  func.func @_pinn_kernel(%arg0: i32, %arg1: memref<8x256xf32, #tpu.memory_space<vmem>>, %arg2: memref<4x32x32xf32, #tpu.memory_space<vmem>>, %arg3: memref<4x32x1xf32, #tpu.memory_space<vmem>>, %arg4: memref<1x256xf32, #tpu.memory_space<vmem>>) attributes {dimension_semantics = [#tpu.dimension_semantics<parallel>], iteration_bounds = array<i64: 1>, scalar_prefetch = 0 : i64, scratch_operands = 0 : i64, tpu.core_type = #tpu.core_type<tc>, window_params = [{transform_indices = @transform_0, window_bounds = array<i64: 8, 256>}, {pipeline_mode = #tpu.pipeline_mode<synchronous>, transform_indices = @transform_1, window_bounds = array<i64: 4, 32, 32>}, {pipeline_mode = #tpu.pipeline_mode<synchronous>, transform_indices = @transform_2, window_bounds = array<i64: 4, 32, 1>}, {transform_indices = @transform_3, window_bounds = array<i64: 1, 256>}]} {
    %c0 = arith.constant 0 : index
    %c0_0 = arith.constant 0 : index
    %0 = vector.load %arg1[%c0, %c0_0] : memref<8x256xf32, #tpu.memory_space<vmem>>, vector<8x256xf32>
    %c0_1 = arith.constant 0 : index
    %c0_2 = arith.constant 0 : index
    %c0_3 = arith.constant 0 : index
    %1 = vector.load %arg2[%c0_1, %c0_2, %c0_3] : memref<4x32x32xf32, #tpu.memory_space<vmem>>, vector<1x32x32xf32>
    %2 = vector.shape_cast %1 : vector<1x32x32xf32> to vector<32x32xf32>
    %3 = vector.extract_strided_slice %2 {offsets = [0, 0], sizes = [32, 8], strides = [1, 1]} : vector<32x32xf32> to vector<32x8xf32>
    %cst = arith.constant dense<0.000000e+00> : vector<32x256xf32>
    %4 = tpu.matmul %3, %0, %cst {dimension_numbers = #tpu.dot_dimension_numbers<[1], [0], [0], [1], [0, 0, 1, 1], [], []>} : vector<32x8xf32>, vector<8x256xf32>, vector<32x256xf32> -> vector<32x256xf32>
    %c0_4 = arith.constant 0 : index
    %c0_5 = arith.constant 0 : index
    %c0_6 = arith.constant 0 : index
    %5 = vector.load %arg3[%c0_4, %c0_5, %c0_6] : memref<4x32x1xf32, #tpu.memory_space<vmem>>, vector<1x32x1xf32>
    %6 = vector.shape_cast %5 : vector<1x32x1xf32> to vector<32x1xf32>
    %7 = vector.broadcast %6 : vector<32x1xf32> to vector<32x256xf32>
    %8 = arith.addf %4, %7 : vector<32x256xf32>
    %9 = math.tanh %8 : vector<32x256xf32>
    %c1 = arith.constant 1 : index
    %c0_7 = arith.constant 0 : index
    %c0_8 = arith.constant 0 : index
    %10 = vector.load %arg2[%c1, %c0_7, %c0_8] : memref<4x32x32xf32, #tpu.memory_space<vmem>>, vector<1x32x32xf32>
    %11 = vector.shape_cast %10 : vector<1x32x32xf32> to vector<32x32xf32>
    %cst_9 = arith.constant dense<0.000000e+00> : vector<32x256xf32>
    %12 = tpu.matmul %11, %9, %cst_9 {dimension_numbers = #tpu.dot_dimension_numbers<[1], [0], [0], [1], [0, 0, 1, 1], [], []>} : vector<32x32xf32>, vector<32x256xf32>, vector<32x256xf32> -> vector<32x256xf32>
    %c1_10 = arith.constant 1 : index
    %c0_11 = arith.constant 0 : index
    %c0_12 = arith.constant 0 : index
    %13 = vector.load %arg3[%c1_10, %c0_11, %c0_12] : memref<4x32x1xf32, #tpu.memory_space<vmem>>, vector<1x32x1xf32>
    %14 = vector.shape_cast %13 : vector<1x32x1xf32> to vector<32x1xf32>
    %15 = vector.broadcast %14 : vector<32x1xf32> to vector<32x256xf32>
    %16 = arith.addf %12, %15 : vector<32x256xf32>
    %17 = math.tanh %16 : vector<32x256xf32>
    %c2 = arith.constant 2 : index
    %c0_13 = arith.constant 0 : index
    %c0_14 = arith.constant 0 : index
    %18 = vector.load %arg2[%c2, %c0_13, %c0_14] : memref<4x32x32xf32, #tpu.memory_space<vmem>>, vector<1x32x32xf32>
    %19 = vector.shape_cast %18 : vector<1x32x32xf32> to vector<32x32xf32>
    %cst_15 = arith.constant dense<0.000000e+00> : vector<32x256xf32>
    %20 = tpu.matmul %19, %17, %cst_15 {dimension_numbers = #tpu.dot_dimension_numbers<[1], [0], [0], [1], [0, 0, 1, 1], [], []>} : vector<32x32xf32>, vector<32x256xf32>, vector<32x256xf32> -> vector<32x256xf32>
    %c2_16 = arith.constant 2 : index
    %c0_17 = arith.constant 0 : index
    %c0_18 = arith.constant 0 : index
    %21 = vector.load %arg3[%c2_16, %c0_17, %c0_18] : memref<4x32x1xf32, #tpu.memory_space<vmem>>, vector<1x32x1xf32>
    %22 = vector.shape_cast %21 : vector<1x32x1xf32> to vector<32x1xf32>
    %23 = vector.broadcast %22 : vector<32x1xf32> to vector<32x256xf32>
    %24 = arith.addf %20, %23 : vector<32x256xf32>
    %25 = math.tanh %24 : vector<32x256xf32>
    %c3 = arith.constant 3 : index
    %c0_19 = arith.constant 0 : index
    %c0_20 = arith.constant 0 : index
    %26 = vector.load %arg2[%c3, %c0_19, %c0_20] : memref<4x32x32xf32, #tpu.memory_space<vmem>>, vector<1x32x32xf32>
    %27 = vector.shape_cast %26 : vector<1x32x32xf32> to vector<32x32xf32>
    %cst_21 = arith.constant dense<0.000000e+00> : vector<32x256xf32>
    %28 = tpu.matmul %27, %25, %cst_21 {dimension_numbers = #tpu.dot_dimension_numbers<[1], [0], [0], [1], [0, 0, 1, 1], [], []>} : vector<32x32xf32>, vector<32x256xf32>, vector<32x256xf32> -> vector<32x256xf32>
    %c3_22 = arith.constant 3 : index
    %c0_23 = arith.constant 0 : index
    %c0_24 = arith.constant 0 : index
    %29 = vector.load %arg3[%c3_22, %c0_23, %c0_24] : memref<4x32x1xf32, #tpu.memory_space<vmem>>, vector<1x32x1xf32>
    %30 = vector.shape_cast %29 : vector<1x32x1xf32> to vector<32x1xf32>
    %31 = vector.broadcast %30 : vector<32x1xf32> to vector<32x256xf32>
    %32 = arith.addf %28, %31 : vector<32x256xf32>
    %33 = vector.extract_strided_slice %32 {offsets = [0, 0], sizes = [1, 256], strides = [1, 1]} : vector<32x256xf32> to vector<1x256xf32>
    %c0_25 = arith.constant 0 : index
    %c0_26 = arith.constant 0 : index
    %34 = vector.load %arg4[%c0_25, %c0_26] : memref<1x256xf32, #tpu.memory_space<vmem>>, vector<1x256xf32>
    tpu.vector_store %arg4[%c0_25, %c0_26], %33 {strides = array<i32>} : memref<1x256xf32, #tpu.memory_space<vmem>>, vector<1x256xf32>,
    return
  }
  func.func @transform_0(%arg0: i32) -> (i32, i32) {
    %c0_i32 = arith.constant 0 : i32
    %c0_i32_0 = arith.constant 0 : i32
    return %c0_i32, %arg0 : i32, i32
  }
  func.func @transform_1(%arg0: i32) -> (i32, i32, i32) {
    %c0_i32 = arith.constant 0 : i32
    %c0_i32_0 = arith.constant 0 : i32
    %c0_i32_1 = arith.constant 0 : i32
    %c0_i32_2 = arith.constant 0 : i32
    return %c0_i32, %c0_i32_0, %c0_i32_1 : i32, i32, i32
  }
  func.func @transform_2(%arg0: i32) -> (i32, i32, i32) {
    %c0_i32 = arith.constant 0 : i32
    %c0_i32_0 = arith.constant 0 : i32
    %c0_i32_1 = arith.constant 0 : i32
    %c0_i32_2 = arith.constant 0 : i32
    return %c0_i32, %c0_i32_0, %c0_i32_1 : i32, i32, i32
  }
  func.func @transform_3(%arg0: i32) -> (i32, i32) {
    %c0_i32 = arith.constant 0 : i32
    %c0_i32_0 = arith.constant 0 : i32
    return %c0_i32, %arg0 : i32, i32
  }
}

</mosaic_0001>

<llo_original>
// kernel: pinn_forward_stacked.1
$region0: #{pinn_forward_stacked.1}
  #allocation0 [shape = 'u32[]', space=smem, size = 0x4, offset = 0x4, fixed_abs, tag = 'smem constant byte address 0x4 - core index']
  #allocation1 [shape = 'u32[144,128]{1,0:T(1,128)}', space=vmem, size = 0x12000, scoped, tag = 'internal scratch']
  %s0 = inlined_call_operand.vmem [shape: f32[8,256], index: 0, kind: input, shape index: {}]
  %s1 = inlined_call_operand.vmem [shape: f32[4,32,32], index: 1, kind: input, shape index: {}]
  %s2 = inlined_call_operand.vmem [shape: f32[4,32,1], index: 2, kind: input, shape index: {}]
  %s3 = inlined_call_operand.hbm [shape: f32[1,256], index: 3, kind: output, shape index: {}]
  %s4 = sld [smem:[#allocation0]]
  $region22: #{pinn_forward_stacked.1} parent=0
    _
  %s6 = ssub.s32 1, %s4
  %s7 = scalar_select 0, %s6, %s4
  $region1: #{pinn_forward_stacked.1} parent=0
    #allocation2 [shape = 'u8[1024]{0}', space=vmem, size = 0x400, scoped, tag = 'output window, operand 0, single buffered']
    #allocation3 [shape = 's32[1]{0}', space=sflag, size = 0x4, scoped, tag = 'scoped memory for pinn_forward_stacked.1']
    %8 = vsyncpa [#allocation3], 0
    // Predicated region
    $region2: #{pinn_forward_stacked.1} parent=1 // pred_check
      _
    $region3: #{pinn_forward_stacked.1} parent=1 // pred_check_branch
      %10 = sbr.rel (0) target = $region5
    $region4: #{pinn_forward_stacked.1} parent=1 // pred_region
      _
    $region5: #{pinn_forward_stacked.1} parent=1 // pred_fallthru
      _
    // Predicated region
    $region6: #{pinn_forward_stacked.1} parent=1 // pred_check
      _
    $region7: #{pinn_forward_stacked.1} parent=1 // pred_check_branch
      %12 = sbr.rel (0) target = $region9
    $region8: #{pinn_forward_stacked.1} parent=1 // pred_region
      _
    $region9: #{pinn_forward_stacked.1} parent=1 // pred_fallthru
      _
    // Predicated region
    $region10: #{pinn_forward_stacked.1} parent=1 // pred_check
      _
    $region11: #{pinn_forward_stacked.1} parent=1 // pred_check_branch
      %14 = sbr.rel (0) target = $region13
    $region12: #{pinn_forward_stacked.1} parent=1 // pred_region
      _
    $region13: #{pinn_forward_stacked.1} parent=1 // pred_fallthru
      _
    %v15 = vld [vmem:[%s0] sm:$0xff]
    %v16 = vld [vmem:[%s0 + $0x8] sm:$0xff]
    %v17 = vld [vmem:[%s1] sm:$0xff]
    %v18 = vld [vmem:[%s1 + $0x8] sm:$0xff]
    %v19 = vld [vmem:[%s1 + $0x10] sm:$0xff]
    %v20 = vld [vmem:[%s1 + $0x18] sm:$0xff]
    %v21 = vld [vmem:[%s2] sm:$0xff]
    %v22 = vld [vmem:[%s2 + $0x8] sm:$0xff]
    %v23 = vld [vmem:[%s2 + $0x10] sm:$0xff]
    %v24 = vld [vmem:[%s2 + $0x18] sm:$0xff]
    %26 = vset.pattern.permute.xlu0 0
    %27 = vperm.xlu0 %26, %v21
    %v28 = vpop.permute.xlu0 %27
    %31 = vset.pattern.permute.xlu0 0
    %32 = vperm.xlu0 %31, %v22
    %v33 = vpop.permute.xlu0 %32
    %36 = vset.pattern.permute.xlu0 0
    %37 = vperm.xlu0 %36, %v23
    %v38 = vpop.permute.xlu0 %37
    %41 = vset.pattern.permute.xlu0 0
    %42 = vperm.xlu0 %41, %v24
    %v43 = vpop.permute.xlu0 %42
    %vm45 = vcmask 64512
    %v47 = vsel %vm45, %v17, 0
    %v50 = vsel %vm45, %v18, 0
    %v53 = vsel %vm45, %v19, 0
    %v56 = vsel %vm45, %v20, 0
    %58 = vmatprep.subr.mxu0 %v16
    %59 = vmatpush1.msra.mxu0 %v15
    %60 = vmatprep.subr.mxu0 0.0
    %61 = vmatpush1.msra.mxu0 0.0
    %62 = vmatprep.subr.mxu0 0.0
    %63 = vmatpush1.msra.mxu0 0.0
    %64 = vmatprep.subr.mxu0 0.0
    %65 = vmatpush1.msra.mxu0 0.0
    %66 = vmatprep.subr.mxu0 0.0
    %67 = vmatpush1.msra.mxu0 0.0
    %68 = vmatprep.subr.mxu0 0.0
    %69 = vmatpush1.msra.mxu0 0.0
    %70 = vmatprep.subr.mxu0 0.0
    %71 = vmatpush1.msra.mxu0 0.0
    %72 = vmatprep.subr.mxu0 0.0
    %73 = vmatpush1.msra.mxu0 0.0
    %74 = vmatprep.subr.mxu0 0.0
    %75 = vmatpush1.msra.mxu0 0.0
    %76 = vmatprep.subr.mxu0 0.0
    %77 = vmatpush1.msra.mxu0 0.0
    %78 = vmatprep.subr.mxu0 0.0
    %79 = vmatpush1.msra.mxu0 0.0
    %80 = vmatprep.subr.mxu0 0.0
    %81 = vmatpush1.msra.mxu0 0.0
    %82 = vmatprep.subr.mxu0 0.0
    %83 = vmatpush1.msra.mxu0 0.0
    %84 = vmatprep.subr.mxu0 0.0
    %85 = vmatpush1.msra.mxu0 0.0
    %86 = vmatprep.subr.mxu0 0.0
    %87 = vmatpush1.msra.mxu0 0.0
    %88 = vmatprep.subr.mxu0 0.0
    %89 = vmatpush1.msra.mxu0 0.0
    %90 = vmatprep.subr.mxu0 0.0
    %91 = vmatpush1.msra.mxu0 0.0
    %92 = vmatprep.subr.mxu0 0.0
    %93 = vmatpush1.msra.mxu0 0.0
    %94 = vmatprep.subr.mxu0 0.0
    %95 = vmatpush1.msra.mxu0 0.0
    %96 = vmatprep.subr.mxu0 0.0
    %97 = vmatpush1.msra.mxu0 0.0
    %98 = vmatprep.subr.mxu0 0.0
    %99 = vmatpush1.msra.mxu0 0.0
    %100 = vmatprep.subr.mxu0 0.0
    %101 = vmatpush1.msra.mxu0 0.0
    %102 = vmatprep.subr.mxu0 0.0
    %103 = vmatpush1.msra.mxu0 0.0
    %104 = vmatprep.subr.mxu0 0.0
    %105 = vmatpush1.msra.mxu0 0.0
    %106 = vmatprep.subr.mxu0 0.0
    %107 = vmatpush1.msra.mxu0 0.0
    %108 = vmatprep.subr.mxu0 0.0
    %109 = vmatpush1.msra.mxu0 0.0
    %110 = vmatprep.subr.mxu0 0.0
    %111 = vmatpush1.msra.mxu0 0.0
    %112 = vmatprep.subr.mxu0 0.0
    %113 = vmatpush1.msra.mxu0 0.0
    %114 = vmatprep.subr.mxu0 0.0
    %115 = vmatpush1.msra.mxu0 0.0
    %116 = vmatprep.subr.mxu0 0.0
    %117 = vmatpush1.msra.mxu0 0.0
    %118 = vmatprep.subr.mxu0 0.0
    %119 = vmatpush1.msra.mxu0 0.0
    %120 = vmatprep.subr.mxu0 0.0
    %121 = vmatpush1.msra.mxu0 0.0
    %122 = vmatprep.mubr.f32.mxu0 0.0
    %123 = vmatmul.mubr.f32.gmra.mrb[0].mxu0 %v47
    %v124 = vpop.f32.mrb[0].mxu0
    %v125 = vadd.f32 %v28, %v124
    %v126 = vpop.f32.mrb[0].mxu0
    %v127 = vadd.f32 %v28, %v126
    %128 = vmatprep.mubr.f32.mxu0 0.0
    %129 = vmatmul.mubr.f32.gmra.mrb[0].mxu0 %v50
    %v130 = vpop.f32.mrb[0].mxu0
    %v131 = vadd.f32 %v33, %v130
    %v132 = vpop.f32.mrb[0].mxu0
    %v133 = vadd.f32 %v33, %v132
    %134 = vmatprep.mubr.f32.mxu0 0.0
    %135 = vmatmul.mubr.f32.gmra.mrb[0].mxu0 %v53
    %v136 = vpop.f32.mrb[0].mxu0
    %v137 = vadd.f32 %v38, %v136
    %v138 = vpop.f32.mrb[0].mxu0
    %v139 = vadd.f32 %v38, %v138
    %140 = vmatprep.mubr.f32.mxu0 0.0
    %141 = vmatmul.mubr.f32.gmra.mrb[0].mxu0 %v56
    %v142 = vpop.f32.mrb[0].mxu0
    %v143 = vadd.f32 %v43, %v142
    %v144 = vpop.f32.mrb[0].mxu0
    %v145 = vadd.f32 %v43, %v144
    %146 = vdwg.mxu0
    %v147 = vtanh.pop %v125
    %v148 = vtanh.pop %v127
    %v149 = vtanh.pop %v131
    %v150 = vtanh.pop %v133
    %v151 = vtanh.pop %v137
    %v152 = vtanh.pop %v139
    %v153 = vtanh.pop %v143
    %v154 = vtanh.pop %v145
    %s155 = scalar_lea.vmem %s1, 32
    %v156 = vld [vmem:[%s155] sm:$0xff]
    %v157 = vld [vmem:[%s155 + $0x8] sm:$0xff]
    %v158 = vld [vmem:[%s155 + $0x10] sm:$0xff]
    %v159 = vld [vmem:[%s155 + $0x18] sm:$0xff]
    %s160 = scalar_lea.vmem %s2, 32
    %v161 = vld [vmem:[%s160] sm:$0xff]
    %v162 = vld [vmem:[%s160 + $0x8] sm:$0xff]
    %v163 = vld [vmem:[%s160 + $0x10] sm:$0xff]
    %v164 = vld [vmem:[%s160 + $0x18] sm:$0xff]
    %166 = vset.pattern.permute.xlu0 0
    %167 = vperm.xlu0 %166, %v161
    %v168 = vpop.permute.xlu0 %167
    %171 = vset.pattern.permute.xlu0 0
    %172 = vperm.xlu0 %171, %v162
    %v173 = vpop.permute.xlu0 %172
    %176 = vset.pattern.permute.xlu0 0
    %177 = vperm.xlu0 %176, %v163
    %v178 = vpop.permute.xlu0 %177
    %181 = vset.pattern.permute.xlu0 0
    %182 = vperm.xlu0 %181, %v164
    %v183 = vpop.permute.xlu0 %182
    %vm185 = vcmask 261120
    %v187 = vsel %vm185, %v156, 0
    %v190 = vsel %vm185, %v157, 0
    %v193 = vsel %vm185, %v158, 0
    %v196 = vsel %vm185, %v159, 0
    %198 = vmatprep.subr.mxu0 %v148
    %199 = vmatpush1.msra.mxu0 %v147
    %200 = vmatprep.subr.mxu0 %v150
    %201 = vmatpush1.msra.mxu0 %v149
    %202 = vmatprep.subr.mxu0 %v152
    %203 = vmatpush1.msra.mxu0 %v151
    %204 = vmatprep.subr.mxu0 %v154
    %205 = vmatpush1.msra.mxu0 %v153
    %206 = vmatprep.subr.mxu0 0.0
    %207 = vmatpush1.msra.mxu0 0.0
    %208 = vmatprep.subr.mxu0 0.0
    %209 = vmatpush1.msra.mxu0 0.0
    %210 = vmatprep.subr.mxu0 0.0
    %211 = vmatpush1.msra.mxu0 0.0
    %212 = vmatprep.subr.mxu0 0.0
    %213 = vmatpush1.msra.mxu0 0.0
    %214 = vmatprep.subr.mxu0 0.0
    %215 = vmatpush1.msra.mxu0 0.0
    %216 = vmatprep.subr.mxu0 0.0
    %217 = vmatpush1.msra.mxu0 0.0
    %218 = vmatprep.subr.mxu0 0.0
    %219 = vmatpush1.msra.mxu0 0.0
    %220 = vmatprep.subr.mxu0 0.0
    %221 = vmatpush1.msra.mxu0 0.0
    %222 = vmatprep.subr.mxu0 0.0
    %223 = vmatpush1.msra.mxu0 0.0
    %224 = vmatprep.subr.mxu0 0.0
    %225 = vmatpush1.msra.mxu0 0.0
    %226 = vmatprep.subr.mxu0 0.0
    %227 = vmatpush1.msra.mxu0 0.0
    %228 = vmatprep.subr.mxu0 0.0
    %229 = vmatpush1.msra.mxu0 0.0
    %230 = vmatprep.subr.mxu0 0.0
    %231 = vmatpush1.msra.mxu0 0.0
    %232 = vmatprep.subr.mxu0 0.0
    %233 = vmatpush1.msra.mxu0 0.0
    %234 = vmatprep.subr.mxu0 0.0
    %235 = vmatpush1.msra.mxu0 0.0
    %236 = vmatprep.subr.mxu0 0.0
    %237 = vmatpush1.msra.mxu0 0.0
    %238 = vmatprep.subr.mxu0 0.0
    %239 = vmatpush1.msra.mxu0 0.0
    %240 = vmatprep.subr.mxu0 0.0
    %241 = vmatpush1.msra.mxu0 0.0
    %242 = vmatprep.subr.mxu0 0.0
    %243 = vmatpush1.msra.mxu0 0.0
    %244 = vmatprep.subr.mxu0 0.0
    %245 = vmatpush1.msra.mxu0 0.0
    %246 = vmatprep.subr.mxu0 0.0
    %247 = vmatpush1.msra.mxu0 0.0
    %248 = vmatprep.subr.mxu0 0.0
    %249 = vmatpush1.msra.mxu0 0.0
    %250 = vmatprep.subr.mxu0 0.0
    %251 = vmatpush1.msra.mxu0 0.0
    %252 = vmatprep.subr.mxu0 0.0
    %253 = vmatpush1.msra.mxu0 0.0
    %254 = vmatprep.subr.mxu0 0.0
    %255 = vmatpush1.msra.mxu0 0.0
    %256 = vmatprep.subr.mxu0 0.0
    %257 = vmatpush1.msra.mxu0 0.0
    %258 = vmatprep.subr.mxu0 0.0
    %259 = vmatpush1.msra.mxu0 0.0
    %260 = vmatprep.subr.mxu0 0.0
    %261 = vmatpush1.msra.mxu0 0.0
    %262 = vmatprep.mubr.f32.mxu0 0.0
    %263 = vmatmul.mubr.f32.gmra.mrb[0].mxu0 %v187
    %v264 = vpop.f32.mrb[0].mxu0
    %v265 = vadd.f32 %v168, %v264
    %v266 = vpop.f32.mrb[0].mxu0
    %v267 = vadd.f32 %v168, %v266
    %268 = vmatprep.mubr.f32.mxu0 0.0
    %269 = vmatmul.mubr.f32.gmra.mrb[0].mxu0 %v190
    %v270 = vpop.f32.mrb[0].mxu0
    %v271 = vadd.f32 %v173, %v270
    %v272 = vpop.f32.mrb[0].mxu0
    %v273 = vadd.f32 %v173, %v272
    %274 = vmatprep.mubr.f32.mxu0 0.0
    %275 = vmatmul.mubr.f32.gmra.mrb[0].mxu0 %v193
    %v276 = vpop.f32.mrb[0].mxu0
    %v277 = vadd.f32 %v178, %v276
    %v278 = vpop.f32.mrb[0].mxu0
    %v279 = vadd.f32 %v178, %v278
    %280 = vmatprep.mubr.f32.mxu0 0.0
    %281 = vmatmul.mubr.f32.gmra.mrb[0].mxu0 %v196
    %v282 = vpop.f32.mrb[0].mxu0
    %v283 = vadd.f32 %v183, %v282
    %v284 = vpop.f32.mrb[0].mxu0
    %v285 = vadd.f32 %v183, %v284
    %286 = vdwg.mxu0
    %v287 = vtanh.pop %v265
    %v288 = vtanh.pop %v267
    %v289 = vtanh.pop %v271
    %v290 = vtanh.pop %v273
    %v291 = vtanh.pop %v277
    %v292 = vtanh.pop %v279
    %v293 = vtanh.pop %v283
    %v294 = vtanh.pop %v285
    %s295 = scalar_lea.vmem %s1, 64
    %v296 = vld [vmem:[%s295] sm:$0xff]
    %v297 = vld [vmem:[%s295 + $0x8] sm:$0xff]
    %v298 = vld [vmem:[%s295 + $0x10] sm:$0xff]
    %v299 = vld [vmem:[%s295 + $0x18] sm:$0xff]
    %s300 = scalar_lea.vmem %s2, 64
    %v301 = vld [vmem:[%s300] sm:$0xff]
    %v302 = vld [vmem:[%s300 + $0x8] sm:$0xff]
    %v303 = vld [vmem:[%s300 + $0x10] sm:$0xff]
    %v304 = vld [vmem:[%s300 + $0x18] sm:$0xff]
    %306 = vset.pattern.permute.xlu0 0
    %307 = vperm.xlu0 %306, %v301
    %v308 = vpop.permute.xlu0 %307
    %311 = vset.pattern.permute.xlu0 0
    %312 = vperm.xlu0 %311, %v302
    %v313 = vpop.permute.xlu0 %312
    %316 = vset.pattern.permute.xlu0 0
    %317 = vperm.xlu0 %316, %v303
    %v318 = vpop.permute.xlu0 %317
    %321 = vset.pattern.permute.xlu0 0
    %322 = vperm.xlu0 %321, %v304
    %v323 = vpop.permute.xlu0 %322
    %v326 = vsel %vm185, %v296, 0
    %v329 = vsel %vm185, %v297, 0
    %v332 = vsel %vm185, %v298, 0
    %v335 = vsel %vm185, %v299, 0
    %337 = vmatprep.subr.mxu0 %v288
    %338 = vmatpush1.msra.mxu0 %v287
    %339 = vmatprep.subr.mxu0 %v290
    %340 = vmatpush1.msra.mxu0 %v289
    %341 = vmatprep.subr.mxu0 %v292
    %342 = vmatpush1.msra.mxu0 %v291
    %343 = vmatprep.subr.mxu0 %v294
    %344 = vmatpush1.msra.mxu0 %v293
    %345 = vmatprep.subr.mxu0 0.0
    %346 = vmatpush1.msra.mxu0 0.0
    %347 = vmatprep.subr.mxu0 0.0
    %348 = vmatpush1.msra.mxu0 0.0
    %349 = vmatprep.subr.mxu0 0.0
    %350 = vmatpush1.msra.mxu0 0.0
    %351 = vmatprep.subr.mxu0 0.0
    %352 = vmatpush1.msra.mxu0 0.0
    %353 = vmatprep.subr.mxu0 0.0
    %354 = vmatpush1.msra.mxu0 0.0
    %355 = vmatprep.subr.mxu0 0.0
    %356 = vmatpush1.msra.mxu0 0.0
    %357 = vmatprep.subr.mxu0 0.0
    %358 = vmatpush1.msra.mxu0 0.0
    %359 = vmatprep.subr.mxu0 0.0
    %360 = vmatpush1.msra.mxu0 0.0
    %361 = vmatprep.subr.mxu0 0.0
    %362 = vmatpush1.msra.mxu0 0.0
    %363 = vmatprep.subr.mxu0 0.0
    %364 = vmatpush1.msra.mxu0 0.0
    %365 = vmatprep.subr.mxu0 0.0
    %366 = vmatpush1.msra.mxu0 0.0
    %367 = vmatprep.subr.mxu0 0.0
    %368 = vmatpush1.msra.mxu0 0.0
    %369 = vmatprep.subr.mxu0 0.0
    %370 = vmatpush1.msra.mxu0 0.0
    %371 = vmatprep.subr.mxu0 0.0
    %372 = vmatpush1.msra.mxu0 0.0
    %373 = vmatprep.subr.mxu0 0.0
    %374 = vmatpush1.msra.mxu0 0.0
    %375 = vmatprep.subr.mxu0 0.0
    %376 = vmatpush1.msra.mxu0 0.0
    %377 = vmatprep.subr.mxu0 0.0
    %378 = vmatpush1.msra.mxu0 0.0
    %379 = vmatprep.subr.mxu0 0.0
    %380 = vmatpush1.msra.mxu0 0.0
    %381 = vmatprep.subr.mxu0 0.0
    %382 = vmatpush1.msra.mxu0 0.0
    %383 = vmatprep.subr.mxu0 0.0
    %384 = vmatpush1.msra.mxu0 0.0
    %385 = vmatprep.subr.mxu0 0.0
    %386 = vmatpush1.msra.mxu0 0.0
    %387 = vmatprep.subr.mxu0 0.0
    %388 = vmatpush1.msra.mxu0 0.0
    %389 = vmatprep.subr.mxu0 0.0
    %390 = vmatpush1.msra.mxu0 0.0
    %391 = vmatprep.subr.mxu0 0.0
    %392 = vmatpush1.msra.mxu0 0.0
    %393 = vmatprep.subr.mxu0 0.0
    %394 = vmatpush1.msra.mxu0 0.0
    %395 = vmatprep.subr.mxu0 0.0
    %396 = vmatpush1.msra.mxu0 0.0
    %397 = vmatprep.subr.mxu0 0.0
    %398 = vmatpush1.msra.mxu0 0.0
    %399 = vmatprep.subr.mxu0 0.0
    %400 = vmatpush1.msra.mxu0 0.0
    %401 = vmatprep.mubr.f32.mxu0 0.0
    %402 = vmatmul.mubr.f32.gmra.mrb[0].mxu0 %v326
    %v403 = vpop.f32.mrb[0].mxu0
    %v404 = vadd.f32 %v308, %v403
    %v405 = vpop.f32.mrb[0].mxu0
    %v406 = vadd.f32 %v308, %v405
    %407 = vmatprep.mubr.f32.mxu0 0.0
    %408 = vmatmul.mubr.f32.gmra.mrb[0].mxu0 %v329
    %v409 = vpop.f32.mrb[0].mxu0
    %v410 = vadd.f32 %v313, %v409
    %v411 = vpop.f32.mrb[0].mxu0
    %v412 = vadd.f32 %v313, %v411
    %413 = vmatprep.mubr.f32.mxu0 0.0
    %414 = vmatmul.mubr.f32.gmra.mrb[0].mxu0 %v332
    %v415 = vpop.f32.mrb[0].mxu0
    %v416 = vadd.f32 %v318, %v415
    %v417 = vpop.f32.mrb[0].mxu0
    %v418 = vadd.f32 %v318, %v417
    %419 = vmatprep.mubr.f32.mxu0 0.0
    %420 = vmatmul.mubr.f32.gmra.mrb[0].mxu0 %v335
    %v421 = vpop.f32.mrb[0].mxu0
    %v422 = vadd.f32 %v323, %v421
    %v423 = vpop.f32.mrb[0].mxu0
    %v424 = vadd.f32 %v323, %v423
    %425 = vdwg.mxu0
    %v426 = vtanh.pop %v404
    %v427 = vtanh.pop %v406
    %v428 = vtanh.pop %v410
    %v429 = vtanh.pop %v412
    %v430 = vtanh.pop %v416
    %v431 = vtanh.pop %v418
    %v432 = vtanh.pop %v422
    %v433 = vtanh.pop %v424
    %s434 = scalar_lea.vmem %s1, 96
    %v435 = vld [vmem:[%s434] sm:$0xff]
    %v436 = vld [vmem:[%s434 + $0x8] sm:$0xff]
    %v437 = vld [vmem:[%s434 + $0x10] sm:$0xff]
    %v438 = vld [vmem:[%s434 + $0x18] sm:$0xff]
    %s439 = scalar_lea.vmem %s2, 96
    %v440 = vld [vmem:[%s439] sm:$0xff]
    %v441 = vld [vmem:[%s439 + $0x8] sm:$0xff]
    %v442 = vld [vmem:[%s439 + $0x10] sm:$0xff]
    %v443 = vld [vmem:[%s439 + $0x18] sm:$0xff]
    %445 = vset.pattern.permute.xlu0 0
    %446 = vperm.xlu0 %445, %v440
    %v447 = vpop.permute.xlu0 %446
    %450 = vset.pattern.permute.xlu0 0
    %451 = vperm.xlu0 %450, %v441
    %v452 = vpop.permute.xlu0 %451
    %454 = vset.pattern.permute.xlu0 0
    %455 = vperm.xlu0 %454, %v442
    %v456 = vpop.permute.xlu0 %455
    %458 = vset.pattern.permute.xlu0 0
    %459 = vperm.xlu0 %458, %v443
    %v460 = vpop.permute.xlu0 %459
    %v462 = vsel %vm185, %v435, 0
    %v465 = vsel %vm185, %v436, 0
    %v468 = vsel %vm185, %v437, 0
    %v471 = vsel %vm185, %v438, 0
    %473 = vmatprep.subr.mxu0 %v427
    %474 = vmatpush1.msra.mxu0 %v426
    %475 = vmatprep.subr.mxu0 %v429
    %476 = vmatpush1.msra.mxu0 %v428
    %477 = vmatprep.subr.mxu0 %v431
    %478 = vmatpush1.msra.mxu0 %v430
    %479 = vmatprep.subr.mxu0 %v433
    %480 = vmatpush1.msra.mxu0 %v432
    %481 = vmatprep.subr.mxu0 0.0
    %482 = vmatpush1.msra.mxu0 0.0
    %483 = vmatprep.subr.mxu0 0.0
    %484 = vmatpush1.msra.mxu0 0.0
    %485 = vmatprep.subr.mxu0 0.0
    %486 = vmatpush1.msra.mxu0 0.0
    %487 = vmatprep.subr.mxu0 0.0
    %488 = vmatpush1.msra.mxu0 0.0
    %489 = vmatprep.subr.mxu0 0.0
    %490 = vmatpush1.msra.mxu0 0.0
    %491 = vmatprep.subr.mxu0 0.0
    %492 = vmatpush1.msra.mxu0 0.0
    %493 = vmatprep.subr.mxu0 0.0
    %494 = vmatpush1.msra.mxu0 0.0
    %495 = vmatprep.subr.mxu0 0.0
    %496 = vmatpush1.msra.mxu0 0.0
    %497 = vmatprep.subr.mxu0 0.0
    %498 = vmatpush1.msra.mxu0 0.0
    %499 = vmatprep.subr.mxu0 0.0
    %500 = vmatpush1.msra.mxu0 0.0
    %501 = vmatprep.subr.mxu0 0.0
    %502 = vmatpush1.msra.mxu0 0.0
    %503 = vmatprep.subr.mxu0 0.0
    %504 = vmatpush1.msra.mxu0 0.0
    %505 = vmatprep.subr.mxu0 0.0
    %506 = vmatpush1.msra.mxu0 0.0
    %507 = vmatprep.subr.mxu0 0.0
    %508 = vmatpush1.msra.mxu0 0.0
    %509 = vmatprep.subr.mxu0 0.0
    %510 = vmatpush1.msra.mxu0 0.0
    %511 = vmatprep.subr.mxu0 0.0
    %512 = vmatpush1.msra.mxu0 0.0
    %513 = vmatprep.subr.mxu0 0.0
    %514 = vmatpush1.msra.mxu0 0.0
    %515 = vmatprep.subr.mxu0 0.0
    %516 = vmatpush1.msra.mxu0 0.0
    %517 = vmatprep.subr.mxu0 0.0
    %518 = vmatpush1.msra.mxu0 0.0
    %519 = vmatprep.subr.mxu0 0.0
    %520 = vmatpush1.msra.mxu0 0.0
    %521 = vmatprep.subr.mxu0 0.0
    %522 = vmatpush1.msra.mxu0 0.0
    %523 = vmatprep.subr.mxu0 0.0
    %524 = vmatpush1.msra.mxu0 0.0
    %525 = vmatprep.subr.mxu0 0.0
    %526 = vmatpush1.msra.mxu0 0.0
    %527 = vmatprep.subr.mxu0 0.0
    %528 = vmatpush1.msra.mxu0 0.0
    %529 = vmatprep.subr.mxu0 0.0
    %530 = vmatpush1.msra.mxu0 0.0
    %531 = vmatprep.subr.mxu0 0.0
    %532 = vmatpush1.msra.mxu0 0.0
    %533 = vmatprep.subr.mxu0 0.0
    %534 = vmatpush1.msra.mxu0 0.0
    %535 = vmatprep.subr.mxu0 0.0
    %536 = vmatpush1.msra.mxu0 0.0
    %537 = vmatprep.mubr.f32.mxu0 0.0
    %538 = vmatmul.mubr.f32.gmra.mrb[0].mxu0 %v462
    %v539 = vpop.f32.mrb[0].mxu0
    %v540 = vadd.f32 %v447, %v539
    %v541 = vpop.f32.mrb[0].mxu0
    %v542 = vadd.f32 %v447, %v541
    %543 = vmatprep.mubr.f32.mxu0 0.0
    %544 = vmatmul.mubr.f32.gmra.mrb[0].mxu0 %v465
    %v545 = vpop.f32.mrb[0].mxu0
    %v546 = vpop.f32.mrb[0].mxu0
    %547 = vmatprep.mubr.f32.mxu0 0.0
    %548 = vmatmul.mubr.f32.gmra.mrb[0].mxu0 %v468
    %v549 = vpop.f32.mrb[0].mxu0
    %v550 = vpop.f32.mrb[0].mxu0
    %551 = vmatprep.mubr.f32.mxu0 0.0
    %552 = vmatmul.mubr.f32.gmra.mrb[0].mxu0 %v471
    %v553 = vpop.f32.mrb[0].mxu0
    %v554 = vpop.f32.mrb[0].mxu0
    %555 = vdwg.mxu0
    %v558 = vcombine.low %v540, %v542
    %v560 = vunpack.c.l.s4 1966171168
    %v561 = vunpack.c.0.s8 %v560
    %v562 = vlaneseq
    %v563 = vshrl.u32 %v562, 7
    %v564 = vsub.s32 %v561, %v563
    %v565 = vrot.slane %v558, %v564
    %v567 = vunpack.c.l.s4 1966171168
    %v568 = vunpack.c.0.s8 %v567
    %v569 = vlaneseq
    %v570 = vshrl.u32 %v569, 7
    %v571 = vsub.s32 %v568, %v570
    %v572 = vrot.slane %v565, %v571
    %v574 = vlaneseq
    %vm575 = vcmp.ge.s32.totalorder %v574, 0
    %vm576 = vcmp.lt.s32.totalorder %v574, 256
    %vm577 = vmand %vm575, %vm576
    %578 = vst.msk [vmem:[#allocation2] sm:$0x3] %vm577, %v572
    // Predicated region
    $region14: #{pinn_forward_stacked.1} parent=1 // pred_check
      _
    $region15: #{pinn_forward_stacked.1} parent=1 // pred_check_branch
      %580 = sbr.rel (0) target = $region17
    $region16: #{pinn_forward_stacked.1} parent=1 // pred_region
      %s582 = ssub.s32 32, 32
      %583 = vsyncadd [#allocation3], %s582
      %s585 = sshll.u32 [#allocation2], 4
      %s586 = int_to_ptr.vmem [resolvable:$true] %s585
      %588 = dma.vmem_to_hbm [thread:$0]  %s586, 32, %s3, [#allocation3]
    $region17: #{pinn_forward_stacked.1} parent=1 // pred_fallthru
      _
    // Predicated region
    $region18: #{pinn_forward_stacked.1} parent=1 // pred_check
      _
    $region19: #{pinn_forward_stacked.1} parent=1 // pred_check_branch
      %590 = sbr.rel (0) target = $region21
    $region20: #{pinn_forward_stacked.1} parent=1 // pred_region
      %591 = dma.done [#allocation3], 32
    $region21: #{pinn_forward_stacked.1} parent=1 // pred_fallthru
      _
    %592 = vsyncpa [#allocation3], 1

</llo_original>
